<compile_context>
chip_gen: v6e
topology: v6e:2x2x1
jax: 0.10.0
libtpu: 0.0.40
codegen_flags: <defaults>
</compile_context>

<pallas_src>
import jax
import jax.numpy as jnp
from jax import lax
from jax.experimental import pallas as pl
from jax.experimental.pallas import tpu as pltpu

BN_EPS = 1e-5
MATMUL_DTYPE = jnp.bfloat16   # MXU operand dtype (f32 accumulation everywhere)


def custom_cnn_head_kernel(feat_ref, w1x1_ref, gamma_ref, beta_ref,
                           wfc1_ref, bfc1_ref, wfc2_ref, bfc2_ref, out_ref):
    # conv1x1 on the backbone's 1x1-spatial features == per-sample channel
    # matmul.  bf16 operands, f32 accumulation.  The conv bias is omitted:
    # BatchNorm1d's mean subtraction cancels it exactly.
    h = jnp.dot(feat_ref[...], w1x1_ref[...],
                preferred_element_type=jnp.float32)                       # [B, C] f32

    # flatten([B, C, 1, 1]) -> [B, C]: no-op in this layout.

    # BatchNorm1d in training mode (batch statistics, biased variance), f32.
    mu = jnp.mean(h, axis=0, keepdims=True)
    diff = h - mu
    var = jnp.mean(diff * diff, axis=0, keepdims=True)
    hn = diff * lax.rsqrt(var + BN_EPS) * gamma_ref[...] + beta_ref[...]  # [B, C]

    # fc1 + ReLU (bf16 operands on the MXU, f32 accumulation + f32 epilogue).
    h1 = jnp.maximum(
        jnp.dot(hn.astype(wfc1_ref.dtype), wfc1_ref[...],
                preferred_element_type=jnp.float32) + bfc1_ref[...], 0.0)  # [B, F]

    # fc2 with a single output feature: VPU multiply + lane reduction instead
    # of an N=1 MXU matmul.
    out_ref[...] = (jnp.sum(h1 * wfc2_ref[...], axis=-1, keepdims=True)
                    + bfc2_ref[...])                                       # [B, 1]


def init_params(key, in_features, num_channels, fc_size):
    # The module's forward only type-checks when the backbone output is 1x1
    # spatial and num_channels == fc_size (BatchNorm1d(fc_size) is applied to
    # the [B, num_channels] flattened tensor before fc1).
    assert num_channels == fc_size
    ks = jax.random.split(key, 6)

    def unif(k, shape, fan_in):
        bound = 1.0 / jnp.sqrt(jnp.float32(fan_in))
        return jax.random.uniform(k, shape, jnp.float32, -bound, bound)

    # conv1x1 weight [C, Cin, 1, 1] stored transposed as [Cin, C]; its bias is
    # intentionally dropped (cancelled by the following BatchNorm1d).
    w1x1 = unif(ks[0], (in_features, num_channels), in_features)
    # Non-trivial BN affine params so the correctness check exercises them.
    gamma = 1.0 + 0.1 * jax.random.normal(ks[1], (fc_size,), jnp.float32)
    beta = 0.1 * jax.random.normal(ks[2], (fc_size,), jnp.float32)
    # fc1 weight [F, C] stored transposed as [C, F].
    wfc1 = unif(ks[3], (num_channels, fc_size), num_channels)
    bfc1 = unif(ks[4], (fc_size,), num_channels)
    # fc2 weight [1, F] stored as a flat [F] row; bias [1].
    kw2, kb2 = jax.random.split(ks[5])
    wfc2 = unif(kw2, (fc_size,), fc_size)
    bfc2 = unif(kb2, (1,), fc_size)
    return (w1x1, gamma, beta, wfc1, bfc1, wfc2, bfc2)


def custom_cnn_forward(x_nchw, params):
    B = x_nchw.shape[0]
    w1x1, gamma, beta, wfc1, bfc1, wfc2, bfc2 = params

    # TODO(synk): self.pretrained_model.features(x) (frozen DenseNet201 /
    # ResNet50 / VGG / ... backbone) has no clean Pallas translation; it is
    # stubbed as a global average pool (run in plain XLA, outside the kernel)
    # so the flattened conv1x1 output matches fc1 / BatchNorm1d exactly as the
    # module requires.
    feat = jnp.mean(x_nchw.astype(jnp.float32), axis=(2, 3))               # [B, Cin]

    args = (feat.astype(MATMUL_DTYPE),
            w1x1.astype(MATMUL_DTYPE),
            gamma[None, :].astype(jnp.float32),
            beta[None, :].astype(jnp.float32),
            wfc1.astype(MATMUL_DTYPE),
            bfc1[None, :].astype(jnp.float32),
            wfc2[None, :].astype(jnp.float32),
            bfc2[None, :].astype(jnp.float32))

    # Scoped-VMEM limit sized to the actual buffers (generous headroom).
    vmem_args_bytes = sum(int(a.size) * a.dtype.itemsize for a in args)
    vmem_limit = int(max(4 * 1024 * 1024, 4 * vmem_args_bytes))

    # Single invocation, no grid, whole arrays resident in VMEM.
    return pl.pallas_call(
        custom_cnn_head_kernel,
        in_specs=[pl.BlockSpec(memory_space=pltpu.MemorySpace.VMEM)
                  for _ in args],
        out_specs=pl.BlockSpec(memory_space=pltpu.MemorySpace.VMEM),
        out_shape=jax.ShapeDtypeStruct((B, 1), jnp.float32),
        compiler_params=pltpu.CompilerParams(vmem_limit_bytes=vmem_limit),
    )(*args)


def reference_forward(x_nchw, params):
    w1x1, gamma, beta, wfc1, bfc1, wfc2, bfc2 = params
    feat = jnp.mean(x_nchw.astype(jnp.float32), axis=(2, 3))      # backbone stub (GAP)
    # Same operand precision as the kernel: bf16 matmul operands, f32 accumulation.
    h = jnp.dot(feat.astype(MATMUL_DTYPE), w1x1.astype(MATMUL_DTYPE),
                preferred_element_type=jnp.float32)               # conv1x1 + flatten
    mu = jnp.mean(h, axis=0, keepdims=True)
    var = jnp.mean((h - mu) ** 2, axis=0, keepdims=True)
    hn = (h - mu) / jnp.sqrt(var + BN_EPS) * gamma + beta         # BatchNorm1d (train)
    h1 = jnp.maximum(
        jnp.dot(hn.astype(MATMUL_DTYPE), wfc1.astype(MATMUL_DTYPE),
                preferred_element_type=jnp.float32) + bfc1, 0.0)  # fc1 + ReLU
    return h1 @ wfc2[:, None] + bfc2[None, :]                     # fc2


if __name__ == "__main__":
    # Small but lane/sublane-aligned demo shapes (B multiple of 8,
    # num_channels == fc_size a multiple of 128).
    B, Cin, H, W = 8, 256, 8, 8
    num_channels = fc_size = 128

    key = jax.random.PRNGKey(0)
    kx, kp = jax.random.split(key)
    x = jax.random.normal(kx, (B, Cin, H, W), dtype=jnp.float32)
    params = init_params(kp, Cin, num_channels, fc_size)

    out = jax.block_until_ready(custom_cnn_forward(x, params))
    ref = reference_forward(x, params)

    assert out.shape == (B, 1)
    assert jnp.allclose(out, ref, atol=2e-3, rtol=2e-3), (out, ref)

    print("KERNEL_OK")
</pallas_src>

<mosaic_0001>
module attributes {stable_mosaic.version = 11 : i64} {
  func.func @custom_cnn_head_kernel(%arg0: memref<8x256xbf16, #tpu.memory_space<vmem>>, %arg1: memref<256x128xbf16, #tpu.memory_space<vmem>>, %arg2: memref<1x128xf32, #tpu.memory_space<vmem>>, %arg3: memref<1x128xf32, #tpu.memory_space<vmem>>, %arg4: memref<128x128xbf16, #tpu.memory_space<vmem>>, %arg5: memref<1x128xf32, #tpu.memory_space<vmem>>, %arg6: memref<1x128xf32, #tpu.memory_space<vmem>>, %arg7: memref<1x1xf32, #tpu.memory_space<vmem>>, %arg8: memref<8x1xf32, #tpu.memory_space<vmem>>) attributes {dimension_semantics = [], scalar_prefetch = 0 : i64, scratch_operands = 0 : i64, tpu.core_type = #tpu.core_type<tc>} {
    %c0 = arith.constant 0 : index
    %c0_0 = arith.constant 0 : index
    %0 = vector.load %arg0[%c0, %c0_0] : memref<8x256xbf16, #tpu.memory_space<vmem>>, vector<8x256xbf16>
    %c0_1 = arith.constant 0 : index
    %c0_2 = arith.constant 0 : index
    %1 = vector.load %arg1[%c0_1, %c0_2] : memref<256x128xbf16, #tpu.memory_space<vmem>>, vector<256x128xbf16>
    %cst = arith.constant dense<0.000000e+00> : vector<8x128xf32>
    %2 = tpu.matmul %0, %1, %cst {dimension_numbers = #tpu.dot_dimension_numbers<[1], [0], [0], [1], [0, 0, 1, 1], [], []>} : vector<8x256xbf16>, vector<256x128xbf16>, vector<8x128xf32> -> vector<8x128xf32>
    %cst_3 = arith.constant dense<0.000000e+00> : vector<128xf32>
    %3 = vector.multi_reduction <add>, %2, %cst_3 [0] : vector<8x128xf32> to vector<128xf32>
    %4 = vector.shape_cast %3 : vector<128xf32> to vector<1x128xf32>
    %cst_4 = arith.constant 8.000000e+00 : f32
    %5 = vector.broadcast %cst_4 : f32 to vector<1x128xf32>
    %6 = arith.divf %4, %5 : vector<1x128xf32>
    %7 = vector.broadcast %6 : vector<1x128xf32> to vector<8x128xf32>
    %8 = arith.subf %2, %7 : vector<8x128xf32>
    %9 = arith.mulf %8, %8 : vector<8x128xf32>
    %cst_5 = arith.constant dense<0.000000e+00> : vector<128xf32>
    %10 = vector.multi_reduction <add>, %9, %cst_5 [0] : vector<8x128xf32> to vector<128xf32>
    %11 = vector.shape_cast %10 : vector<128xf32> to vector<1x128xf32>
    %cst_6 = arith.constant 8.000000e+00 : f32
    %12 = vector.broadcast %cst_6 : f32 to vector<1x128xf32>
    %13 = arith.divf %11, %12 : vector<1x128xf32>
    %cst_7 = arith.constant 9.99999974E-6 : f32
    %14 = vector.broadcast %cst_7 : f32 to vector<1x128xf32>
    %15 = arith.addf %13, %14 : vector<1x128xf32>
    %16 = math.rsqrt %15 : vector<1x128xf32>
    %17 = vector.broadcast %16 : vector<1x128xf32> to vector<8x128xf32>
    %18 = arith.mulf %8, %17 : vector<8x128xf32>
    %c0_8 = arith.constant 0 : index
    %c0_9 = arith.constant 0 : index
    %19 = vector.load %arg2[%c0_8, %c0_9] : memref<1x128xf32, #tpu.memory_space<vmem>>, vector<1x128xf32>
    %20 = vector.broadcast %19 : vector<1x128xf32> to vector<8x128xf32>
    %21 = arith.mulf %18, %20 : vector<8x128xf32>
    %c0_10 = arith.constant 0 : index
    %c0_11 = arith.constant 0 : index
    %22 = vector.load %arg3[%c0_10, %c0_11] : memref<1x128xf32, #tpu.memory_space<vmem>>, vector<1x128xf32>
    %23 = vector.broadcast %22 : vector<1x128xf32> to vector<8x128xf32>
    %24 = arith.addf %21, %23 : vector<8x128xf32>
    %25 = arith.truncf %24 : vector<8x128xf32> to vector<8x128xbf16>
    %c0_12 = arith.constant 0 : index
    %c0_13 = arith.constant 0 : index
    %26 = vector.load %arg4[%c0_12, %c0_13] : memref<128x128xbf16, #tpu.memory_space<vmem>>, vector<128x128xbf16>
    %cst_14 = arith.constant dense<0.000000e+00> : vector<8x128xf32>
    %27 = tpu.matmul %25, %26, %cst_14 {dimension_numbers = #tpu.dot_dimension_numbers<[1], [0], [0], [1], [0, 0, 1, 1], [], []>} : vector<8x128xbf16>, vector<128x128xbf16>, vector<8x128xf32> -> vector<8x128xf32>
    %c0_15 = arith.constant 0 : index
    %c0_16 = arith.constant 0 : index
    %28 = vector.load %arg5[%c0_15, %c0_16] : memref<1x128xf32, #tpu.memory_space<vmem>>, vector<1x128xf32>
    %29 = vector.broadcast %28 : vector<1x128xf32> to vector<8x128xf32>
    %30 = arith.addf %27, %29 : vector<8x128xf32>
    %cst_17 = arith.constant 0.000000e+00 : f32
    %31 = vector.broadcast %cst_17 : f32 to vector<8x128xf32>
    %32 = arith.maximumf %30, %31 : vector<8x128xf32>
    %c0_18 = arith.constant 0 : index
    %c0_19 = arith.constant 0 : index
    %33 = vector.load %arg6[%c0_18, %c0_19] : memref<1x128xf32, #tpu.memory_space<vmem>>, vector<1x128xf32>
    %34 = vector.broadcast %33 : vector<1x128xf32> to vector<8x128xf32>
    %35 = arith.mulf %32, %34 : vector<8x128xf32>
    %cst_20 = arith.constant dense<0.000000e+00> : vector<8xf32>
    %36 = vector.multi_reduction <add>, %35, %cst_20 [1] : vector<8x128xf32> to vector<8xf32>
    %37 = vector.shape_cast %36 : vector<8xf32> to vector<8x1xf32>
    %c0_21 = arith.constant 0 : index
    %c0_22 = arith.constant 0 : index
    %38 = vector.load %arg7[%c0_21, %c0_22] : memref<1x1xf32, #tpu.memory_space<vmem>>, vector<1x1xf32>
    %39 = vector.broadcast %38 : vector<1x1xf32> to vector<8x1xf32>
    %40 = arith.addf %37, %39 : vector<8x1xf32>
    %c0_23 = arith.constant 0 : index
    %c0_24 = arith.constant 0 : index
    %41 = vector.load %arg8[%c0_23, %c0_24] : memref<8x1xf32, #tpu.memory_space<vmem>>, vector<8x1xf32>
    tpu.vector_store %arg8[%c0_23, %c0_24], %40 {strides = array<i32>} : memref<8x1xf32, #tpu.memory_space<vmem>>, vector<8x1xf32>,
    return
  }
}

</mosaic_0001>

<llo_original>
// kernel: tpu_custom_call.1
$region0: #{tpu_custom_call.1}
  #allocation0 [shape = 'u32[]', space=smem, size = 0x4, offset = 0x4, fixed_abs, tag = 'smem constant byte address 0x4 - core index']
  #allocation1 [shape = 'u32[144,128]{1,0:T(1,128)}', space=vmem, size = 0x12000, scoped, tag = 'internal scratch']
  #allocation2 [shape = 'f32[1,1]{1,0:T(1,128)S(1)}', space=vmem, size = 0x200, scoped, tag = 'scoped memory for tpu_custom_call.1']
  %s0 = inlined_call_operand.hbm [shape: bf16[8,256], index: 0, kind: input, shape index: {}]
  %s1 = inlined_call_operand.hbm [shape: bf16[256,128], index: 1, kind: input, shape index: {}]
  %s2 = inlined_call_operand.vmem [shape: f32[1,128], index: 2, kind: input, shape index: {}]
  %s3 = inlined_call_operand.vmem [shape: f32[1,128], index: 3, kind: input, shape index: {}]
  %s4 = inlined_call_operand.hbm [shape: bf16[128,128], index: 4, kind: input, shape index: {}]
  %s5 = inlined_call_operand.vmem [shape: f32[1,128], index: 5, kind: input, shape index: {}]
  %s6 = inlined_call_operand.vmem [shape: f32[1,128], index: 6, kind: input, shape index: {}]
  %s7 = inlined_call_operand.<no memory space> [shape: f32[1,1], index: 7, kind: input, shape index: {}]
  %s8 = inlined_call_operand.vmem [shape: f32[8,1], index: 8, kind: output, shape index: {}]
  %s9 = sld [smem:[#allocation0]]
  $region54: #{tpu_custom_call.1} parent=0
    _
  %s11 = ssub.s32 1, %s9
  %s12 = scalar_select 0, %s11, %s9
  %v13 = vstv %s7
  %14 = vst [vmem:[#allocation2] sm:$0x1] %v13
  $region1: #{tpu_custom_call.1} parent=0
    #allocation3 [shape = 'u8[4096]{0}', space=vmem, size = 0x1000, scoped, tag = 'input window, operand 0, single buffered']
    #allocation4 [shape = 's32[1]{0}', space=sflag, size = 0x4, scoped, tag = 'scoped memory for tpu_custom_call.1']
    #allocation5 [shape = 'u8[65536]{0}', space=vmem, size = 0x10000, scoped, tag = 'input window, operand 1, single buffered']
    #allocation6 [shape = 's32[1]{0}', space=sflag, size = 0x4, scoped, tag = 'scoped memory for tpu_custom_call.1']
    #allocation7 [shape = 'u8[32768]{0}', space=vmem, size = 0x8000, scoped, tag = 'input window, operand 4, single buffered']
    %15 = vsyncpa [#allocation4], 0
    %16 = vsyncpa [#allocation6], 0
    // Predicated region
    $region2: #{tpu_custom_call.1} parent=1 // pred_check
      _
    $region3: #{tpu_custom_call.1} parent=1 // pred_check_branch
      %18 = sbr.rel (0) target = $region5
    $region4: #{tpu_custom_call.1} parent=1 // pred_region
      %s20 = ssub.s32 128, 128
      %21 = vsyncadd [#allocation4], %s20
      %s23 = sshll.u32 [#allocation3], 4
      %s24 = int_to_ptr.vmem [resolvable:$true] %s23
      %26 = dma.hbm_to_vmem [thread:$0]  %s0, 128, %s24, [#allocation4]
    $region5: #{tpu_custom_call.1} parent=1 // pred_fallthru
      _
    // Predicated region
    $region6: #{tpu_custom_call.1} parent=1 // pred_check
      _
    $region7: #{tpu_custom_call.1} parent=1 // pred_check_branch
      %28 = sbr.rel (0) target = $region9
    $region8: #{tpu_custom_call.1} parent=1 // pred_region
      %s30 = ssub.s32 2048, 2048
      %31 = vsyncadd [#allocation6], %s30
      %s32 = sshll.u32 [#allocation5], 4
      %s33 = int_to_ptr.vmem [resolvable:$true] %s32
      %38 = dma.hbm_to_vmem [thread:$0]  %s1, 2048, %s33, [#allocation6], 64, 64, 4
    $region9: #{tpu_custom_call.1} parent=1 // pred_fallthru
      _
    // Predicated region
    $region10: #{tpu_custom_call.1} parent=1 // pred_check
      _
    $region11: #{tpu_custom_call.1} parent=1 // pred_check_branch
      %40 = sbr.rel (0) target = $region13
    $region12: #{tpu_custom_call.1} parent=1 // pred_region
      _
    $region13: #{tpu_custom_call.1} parent=1 // pred_fallthru
      _
    // Predicated region
    $region14: #{tpu_custom_call.1} parent=1 // pred_check
      _
    $region15: #{tpu_custom_call.1} parent=1 // pred_check_branch
      %42 = sbr.rel (0) target = $region17
    $region16: #{tpu_custom_call.1} parent=1 // pred_region
      _
    $region17: #{tpu_custom_call.1} parent=1 // pred_fallthru
      _
    // Predicated region
    $region18: #{tpu_custom_call.1} parent=1 // pred_check
      _
    $region19: #{tpu_custom_call.1} parent=1 // pred_check_branch
      %44 = sbr.rel (0) target = $region21
    $region20: #{tpu_custom_call.1} parent=1 // pred_region
      %s46 = ssub.s32 1024, 1024
      %47 = vsyncadd [#allocation6], %s46
      %s48 = sshll.u32 [#allocation7], 4
      %s49 = int_to_ptr.vmem [resolvable:$true] %s48
      %54 = dma.hbm_to_vmem [thread:$0]  %s4, 1024, %s49, [#allocation6], 64, 64, 4
    $region21: #{tpu_custom_call.1} parent=1 // pred_fallthru
      _
    // Predicated region
    $region22: #{tpu_custom_call.1} parent=1 // pred_check
      _
    $region23: #{tpu_custom_call.1} parent=1 // pred_check_branch
      %56 = sbr.rel (0) target = $region25
    $region24: #{tpu_custom_call.1} parent=1 // pred_region
      _
    $region25: #{tpu_custom_call.1} parent=1 // pred_fallthru
      _
    // Predicated region
    $region26: #{tpu_custom_call.1} parent=1 // pred_check
      _
    $region27: #{tpu_custom_call.1} parent=1 // pred_check_branch
      %58 = sbr.rel (0) target = $region29
    $region28: #{tpu_custom_call.1} parent=1 // pred_region
      _
    $region29: #{tpu_custom_call.1} parent=1 // pred_fallthru
      _
    // Predicated region
    $region30: #{tpu_custom_call.1} parent=1 // pred_check
      _
    $region31: #{tpu_custom_call.1} parent=1 // pred_check_branch
      %60 = sbr.rel (0) target = $region33
    $region32: #{tpu_custom_call.1} parent=1 // pred_region
      _
    $region33: #{tpu_custom_call.1} parent=1 // pred_fallthru
      _
    // Predicated region
    $region34: #{tpu_custom_call.1} parent=1 // pred_check
      _
    $region35: #{tpu_custom_call.1} parent=1 // pred_check_branch
      %62 = sbr.rel (0) target = $region37
    $region36: #{tpu_custom_call.1} parent=1 // pred_region
      %63 = dma.done [#allocation4], 128
    $region37: #{tpu_custom_call.1} parent=1 // pred_fallthru
      _
    // Predicated region
    $region38: #{tpu_custom_call.1} parent=1 // pred_check
      _
    $region39: #{tpu_custom_call.1} parent=1 // pred_check_branch
      %65 = sbr.rel (0) target = $region41
    $region40: #{tpu_custom_call.1} parent=1 // pred_region
      %66 = dma.done [#allocation6], 2048
    $region41: #{tpu_custom_call.1} parent=1 // pred_fallthru
      _
    // Predicated region
    $region42: #{tpu_custom_call.1} parent=1 // pred_check
      _
    $region43: #{tpu_custom_call.1} parent=1 // pred_check_branch
      %68 = sbr.rel (0) target = $region45
    $region44: #{tpu_custom_call.1} parent=1 // pred_region
      %69 = dma.done [#allocation6], 1024
    $region45: #{tpu_custom_call.1} parent=1 // pred_fallthru
      _
    %v71 = vld [vmem:[#allocation3] sm:$0xff]
    %v72 = vld [vmem:[#allocation5] sm:$0xf]
    %v73 = vld [vmem:[#allocation5 + $0x4] sm:$0xf]
    %v74 = vld [vmem:[#allocation5 + $0x8] sm:$0xf]
    %v75 = vld [vmem:[#allocation5 + $0xc] sm:$0xf]
    %v76 = vld [vmem:[#allocation5 + $0x10] sm:$0xf]
    %v77 = vld [vmem:[#allocation5 + $0x14] sm:$0xf]
    %v78 = vld [vmem:[#allocation5 + $0x18] sm:$0xf]
    %v79 = vld [vmem:[#allocation5 + $0x1c] sm:$0xf]
    %v80 = vld [vmem:[#allocation5 + $0x20] sm:$0xf]
    %v81 = vld [vmem:[#allocation5 + $0x24] sm:$0xf]
    %v82 = vld [vmem:[#allocation5 + $0x28] sm:$0xf]
    %v83 = vld [vmem:[#allocation5 + $0x2c] sm:$0xf]
    %v84 = vld [vmem:[#allocation5 + $0x30] sm:$0xf]
    %v85 = vld [vmem:[#allocation5 + $0x34] sm:$0xf]
    %v86 = vld [vmem:[#allocation5 + $0x38] sm:$0xf]
    %v87 = vld [vmem:[#allocation5 + $0x3c] sm:$0xf]
    %v88 = vld [vmem:[#allocation5 + $0x40] sm:$0xf]
    %v89 = vld [vmem:[#allocation5 + $0x44] sm:$0xf]
    %v90 = vld [vmem:[#allocation5 + $0x48] sm:$0xf]
    %v91 = vld [vmem:[#allocation5 + $0x4c] sm:$0xf]
    %v92 = vld [vmem:[#allocation5 + $0x50] sm:$0xf]
    %v93 = vld [vmem:[#allocation5 + $0x54] sm:$0xf]
    %v94 = vld [vmem:[#allocation5 + $0x58] sm:$0xf]
    %v95 = vld [vmem:[#allocation5 + $0x5c] sm:$0xf]
    %v96 = vld [vmem:[#allocation5 + $0x60] sm:$0xf]
    %v97 = vld [vmem:[#allocation5 + $0x64] sm:$0xf]
    %v98 = vld [vmem:[#allocation5 + $0x68] sm:$0xf]
    %v99 = vld [vmem:[#allocation5 + $0x6c] sm:$0xf]
    %v100 = vld [vmem:[#allocation5 + $0x70] sm:$0xf]
    %v101 = vld [vmem:[#allocation5 + $0x74] sm:$0xf]
    %v102 = vld [vmem:[#allocation5 + $0x78] sm:$0xf]
    %v103 = vld [vmem:[#allocation5 + $0x7c] sm:$0xf]
    %v105 = vunpack.c.l.b16 %v71
    %v106 = vunpack.c.h.b16 %v71
    %v107 = vpack.c.b16 %v105, %v105
    %v108 = vpack.c.b16 %v106, %v106
    %v143 = vunpack.c.l.b16 %v72
    %v144 = vunpack.c.l.b16 %v73
    %v145 = vunpack.c.l.b16 %v74
    %v146 = vunpack.c.l.b16 %v75
    %v147 = vunpack.c.l.b16 %v76
    %v148 = vunpack.c.l.b16 %v77
    %v149 = vunpack.c.l.b16 %v78
    %v150 = vunpack.c.l.b16 %v79
    %v151 = vunpack.c.l.b16 %v80
    %v152 = vunpack.c.l.b16 %v81
    %v153 = vunpack.c.l.b16 %v82
    %v154 = vunpack.c.l.b16 %v83
    %v155 = vunpack.c.l.b16 %v84
    %v156 = vunpack.c.l.b16 %v85
    %v157 = vunpack.c.l.b16 %v86
    %v158 = vunpack.c.l.b16 %v87
    %v159 = vunpack.c.l.b16 %v88
    %v160 = vunpack.c.l.b16 %v89
    %v161 = vunpack.c.l.b16 %v90
    %v162 = vunpack.c.l.b16 %v91
    %v163 = vunpack.c.l.b16 %v92
    %v164 = vunpack.c.l.b16 %v93
    %v165 = vunpack.c.l.b16 %v94
    %v166 = vunpack.c.l.b16 %v95
    %v167 = vunpack.c.l.b16 %v96
    %v168 = vunpack.c.l.b16 %v97
    %v169 = vunpack.c.l.b16 %v98
    %v170 = vunpack.c.l.b16 %v99
    %v171 = vunpack.c.l.b16 %v100
    %v172 = vunpack.c.l.b16 %v101
    %v173 = vunpack.c.l.b16 %v102
    %v174 = vunpack.c.l.b16 %v103
    %v175 = vpack.c.b16 %v144, %v143
    %v176 = vpack.c.b16 %v146, %v145
    %v177 = vpack.c.b16 %v148, %v147
    %v178 = vpack.c.b16 %v150, %v149
    %v179 = vpack.c.b16 %v152, %v151
    %v180 = vpack.c.b16 %v154, %v153
    %v181 = vpack.c.b16 %v156, %v155
    %v182 = vpack.c.b16 %v158, %v157
    %v183 = vpack.c.b16 %v160, %v159
    %v184 = vpack.c.b16 %v162, %v161
    %v185 = vpack.c.b16 %v164, %v163
    %v186 = vpack.c.b16 %v166, %v165
    %v187 = vpack.c.b16 %v168, %v167
    %v188 = vpack.c.b16 %v170, %v169
    %v189 = vpack.c.b16 %v172, %v171
    %v190 = vpack.c.b16 %v174, %v173
    %207 = vmatprep.subr.bf16.mxu0 0
    %208 = vmatpush1.bf16.msra.mxu0 %v182
    %209 = vmatprep.subr.bf16.mxu0 0
    %210 = vmatpush1.bf16.msra.mxu0 %v181
    %211 = vmatprep.subr.bf16.mxu0 0
    %212 = vmatpush1.bf16.msra.mxu0 %v180
    %213 = vmatprep.subr.bf16.mxu0 0
    %214 = vmatpush1.bf16.msra.mxu0 %v179
    %215 = vmatprep.subr.bf16.mxu0 0
    %216 = vmatpush1.bf16.msra.mxu0 %v178
    %217 = vmatprep.subr.bf16.mxu0 0
    %218 = vmatpush1.bf16.msra.mxu0 %v177
    %219 = vmatprep.subr.bf16.mxu0 0
    %220 = vmatpush1.bf16.msra.mxu0 %v176
    %221 = vmatprep.subr.bf16.mxu0 0
    %222 = vmatpush1.bf16.msra.mxu0 %v175
    %223 = vmatprep.subr.bf16.mxu0 0
    %224 = vmatpush2.bf16.msra.mxu0 %v190
    %225 = vmatprep.subr.bf16.mxu0 0
    %226 = vmatpush2.bf16.msra.mxu0 %v189
    %227 = vmatprep.subr.bf16.mxu0 0
    %228 = vmatpush2.bf16.msra.mxu0 %v188
    %229 = vmatprep.subr.bf16.mxu0 0
    %230 = vmatpush2.bf16.msra.mxu0 %v187
    %231 = vmatprep.subr.bf16.mxu0 0
    %232 = vmatpush2.bf16.msra.mxu0 %v186
    %233 = vmatprep.subr.bf16.mxu0 0
    %234 = vmatpush2.bf16.msra.mxu0 %v185
    %235 = vmatprep.subr.bf16.mxu0 0
    %236 = vmatpush2.bf16.msra.mxu0 %v184
    %237 = vmatprep.subr.bf16.mxu0 0
    %238 = vmatpush2.bf16.msra.mxu0 %v183
    %239 = vmatprep.mubr.bf16.mxu0 %v108
    %240 = vmatmul.mubr.bf16.gmra.mxu0 %v107
    %v241 = vpop.f32.mrf.mxu0
    %v242 = vadd.f32 0.0, %v241
    %v243 = vpop.f32.mrf.mxu0
    %v244 = vpop.f32.mrf.mxu0
    %v245 = vpop.f32.mrf.mxu0
    %246 = vdwg.mxu0
    %v247 = vrot.slane %v242, 4
    %v248 = vadd.f32 %v242, %v247
    %v249 = vrot.slane %v248, 2
    %v250 = vadd.f32 %v248, %v249
    %v251 = vrot.slane %v250, 1
    %v252 = vadd.f32 %v250, %v251
    %v253 = vrcp.pop 8.0
    %v254 = vmul.f32 %v252, %v253
    %v255 = vsub.f32 %v242, %v254
    %v256 = vmul.f32 %v255, %v255
    %v257 = vrot.slane %v256, 4
    %v258 = vadd.f32 %v256, %v257
    %v259 = vrot.slane %v258, 2
    %v260 = vadd.f32 %v258, %v259
    %v261 = vrot.slane %v260, 1
    %v262 = vadd.f32 %v260, %v261
    %v263 = vmul.f32 %v262, %v253
    %v264 = vadd.f32 %v263, 1e-05
    %v265 = vrsqrt.pop %v264
    %v266 = vmul.f32 %v255, %v265
    %v267 = vld [vmem:[%s2] sm:$0x1]
    %v269 = vlaneseq
    %v270 = vshrl.u32 %v269, 7
    %v271 = vsub.s32 0, %v270
    %v272 = vrot.slane %v267, %v271
    %v274 = vmul.f32 %v266, %v272
    %v275 = vld [vmem:[%s3] sm:$0x1]
    %v277 = vlaneseq
    %v278 = vshrl.u32 %v277, 7
    %v279 = vsub.s32 0, %v278
    %v280 = vrot.slane %v275, %v279
    %v282 = vadd.f32 %v274, %v280
    %v283 = vpack.c.bf16 %v282, %v282
    %v284 = vld [vmem:[#allocation7] sm:$0xf]
    %v285 = vld [vmem:[#allocation7 + $0x4] sm:$0xf]
    %v286 = vld [vmem:[#allocation7 + $0x8] sm:$0xf]
    %v287 = vld [vmem:[#allocation7 + $0xc] sm:$0xf]
    %v288 = vld [vmem:[#allocation7 + $0x10] sm:$0xf]
    %v289 = vld [vmem:[#allocation7 + $0x14] sm:$0xf]
    %v290 = vld [vmem:[#allocation7 + $0x18] sm:$0xf]
    %v291 = vld [vmem:[#allocation7 + $0x1c] sm:$0xf]
    %v292 = vld [vmem:[#allocation7 + $0x20] sm:$0xf]
    %v293 = vld [vmem:[#allocation7 + $0x24] sm:$0xf]
    %v294 = vld [vmem:[#allocation7 + $0x28] sm:$0xf]
    %v295 = vld [vmem:[#allocation7 + $0x2c] sm:$0xf]
    %v296 = vld [vmem:[#allocation7 + $0x30] sm:$0xf]
    %v297 = vld [vmem:[#allocation7 + $0x34] sm:$0xf]
    %v298 = vld [vmem:[#allocation7 + $0x38] sm:$0xf]
    %v299 = vld [vmem:[#allocation7 + $0x3c] sm:$0xf]
    %v300 = vld [vmem:[%s5] sm:$0x1]
    %v302 = vlaneseq
    %v303 = vshrl.u32 %v302, 7
    %v304 = vsub.s32 0, %v303
    %v305 = vrot.slane %v300, %v304
    %v323 = vunpack.c.l.b16 %v284
    %v324 = vunpack.c.l.b16 %v285
    %v325 = vunpack.c.l.b16 %v286
    %v326 = vunpack.c.l.b16 %v287
    %v327 = vunpack.c.l.b16 %v288
    %v328 = vunpack.c.l.b16 %v289
    %v329 = vunpack.c.l.b16 %v290
    %v330 = vunpack.c.l.b16 %v291
    %v331 = vunpack.c.l.b16 %v292
    %v332 = vunpack.c.l.b16 %v293
    %v333 = vunpack.c.l.b16 %v294
    %v334 = vunpack.c.l.b16 %v295
    %v335 = vunpack.c.l.b16 %v296
    %v336 = vunpack.c.l.b16 %v297
    %v337 = vunpack.c.l.b16 %v298
    %v338 = vunpack.c.l.b16 %v299
    %v339 = vpack.c.b16 %v324, %v323
    %v340 = vpack.c.b16 %v326, %v325
    %v341 = vpack.c.b16 %v328, %v327
    %v342 = vpack.c.b16 %v330, %v329
    %v343 = vpack.c.b16 %v332, %v331
    %v344 = vpack.c.b16 %v334, %v333
    %v345 = vpack.c.b16 %v336, %v335
    %v346 = vpack.c.b16 %v338, %v337
    %355 = vmatprep.subr.bf16.mxu0 0
    %356 = vmatpush1.bf16.msra.mxu0 %v346
    %357 = vmatprep.subr.bf16.mxu0 0
    %358 = vmatpush1.bf16.msra.mxu0 %v345
    %359 = vmatprep.subr.bf16.mxu0 0
    %360 = vmatpush1.bf16.msra.mxu0 %v344
    %361 = vmatprep.subr.bf16.mxu0 0
    %362 = vmatpush1.bf16.msra.mxu0 %v343
    %363 = vmatprep.subr.bf16.mxu0 0
    %364 = vmatpush1.bf16.msra.mxu0 %v342
    %365 = vmatprep.subr.bf16.mxu0 0
    %366 = vmatpush1.bf16.msra.mxu0 %v341
    %367 = vmatprep.subr.bf16.mxu0 0
    %368 = vmatpush1.bf16.msra.mxu0 %v340
    %369 = vmatprep.subr.bf16.mxu0 0
    %370 = vmatpush1.bf16.msra.mxu0 %v339
    %371 = vmatprep.subr.bf16.mxu0 0
    %372 = vmatpush2.bf16.msra.mxu0 0
    %373 = vmatprep.subr.bf16.mxu0 0
    %374 = vmatpush2.bf16.msra.mxu0 0
    %375 = vmatprep.subr.bf16.mxu0 0
    %376 = vmatpush2.bf16.msra.mxu0 0
    %377 = vmatprep.subr.bf16.mxu0 0
    %378 = vmatpush2.bf16.msra.mxu0 0
    %379 = vmatprep.subr.bf16.mxu0 0
    %380 = vmatpush2.bf16.msra.mxu0 0
    %381 = vmatprep.subr.bf16.mxu0 0
    %382 = vmatpush2.bf16.msra.mxu0 0
    %383 = vmatprep.subr.bf16.mxu0 0
    %384 = vmatpush2.bf16.msra.mxu0 0
    %385 = vmatprep.subr.bf16.mxu0 0
    %386 = vmatpush2.bf16.msra.mxu0 0
    %387 = vmatprep.mubr.bf16.mxu0 0
    %388 = vmatmul.mubr.bf16.gmra.mxu0 %v283
    %v389 = vpop.f32.mrf.mxu0
    %v390 = vadd.f32 %v305, %v389
    %v391 = vpop.f32.mrf.mxu0
    %v392 = vpop.f32.mrf.mxu0
    %v393 = vpop.f32.mrf.mxu0
    %394 = vdwg.mxu0
    %v395 = vmax.f32 %v390, 0.0
    %v396 = vld [vmem:[%s6] sm:$0x1]
    %v398 = vlaneseq
    %v399 = vshrl.u32 %v398, 7
    %v400 = vsub.s32 0, %v399
    %v401 = vrot.slane %v396, %v400
    %v403 = vmul.f32 %v395, %v401
    %404 = vadd.xlane.f32.xlu0 %v403
    %v405 = vpop.xlane.xlu0 %404
    %v406 = vld [vmem:[#allocation2] sm:$0x1]
    %v408 = vlaneseq
    %v409 = vshrl.u32 %v408, 7
    %v410 = vsub.s32 0, %v409
    %v411 = vrot.slane %v406, %v410
    %v413 = vadd.f32 %v405, %v411
    %vm414 = vcmask 7168
    %415 = vst.msk [vmem:[%s8] sm:$0xff] %vm414, %v413
    // Predicated region
    $region46: #{tpu_custom_call.1} parent=1 // pred_check
      _
    $region47: #{tpu_custom_call.1} parent=1 // pred_check_branch
      %417 = sbr.rel (0) target = $region49
    $region48: #{tpu_custom_call.1} parent=1 // pred_region
      _
    $region49: #{tpu_custom_call.1} parent=1 // pred_fallthru
      _
    // Predicated region
    $region50: #{tpu_custom_call.1} parent=1 // pred_check
      _
    $region51: #{tpu_custom_call.1} parent=1 // pred_check_branch
      %419 = sbr.rel (0) target = $region53
    $region52: #{tpu_custom_call.1} parent=1 // pred_region
      _
    $region53: #{tpu_custom_call.1} parent=1 // pred_fallthru
      _
    %420 = vsyncpa [#allocation4], 1
    %421 = vsyncpa [#allocation6], 1

</llo_original>
